<compile_context>
chip_gen: v7x
topology: tpu7x:2x2x1
jax: 0.10.0
libtpu: 0.0.40
codegen_flags: <defaults>
</compile_context>

<pallas_src>
import math
import numpy as np
import jax
import jax.numpy as jnp
from jax import lax
from jax.experimental import pallas as pl
from jax.experimental.pallas import tpu as pltpu

# ---------------- config (small, deterministic) ----------------
B = 2          # batch
S = 8          # seq length
D = 32         # d_model
H = 4          # n_heads
DH = 8         # d_head
DM = 128       # d_mlp
EPS = 1e-5

BS = B * S             # 16   rows of the fused residual slab
HD = H * DH            # 32   fused head width
QKV = 3 * HD           # 96   fused QKV output width
SK = H * BS            # 64   stacked (head, key-token) axis of the fused attention core
NEG_INF = -1e9

# bf16 matmul operands (f32 accumulate) per perf review.  Set to jnp.float32 for exact
# 1e-4 parity with the f32 reference.
MATMUL_DTYPE = jnp.bfloat16
APPROX_RECIP = MATMUL_DTYPE == jnp.bfloat16


def _layernorm(x, w, b):
    mu = jnp.mean(x, axis=-1, keepdims=True)
    xc = x - mu
    var = jnp.mean(xc * xc, axis=-1, keepdims=True)
    return xc * lax.rsqrt(var + EPS) * w + b


def _gelu(x):
    # exact (erf) GELU, matching torch.nn.functional.gelu default
    return 0.5 * x * (1.0 + lax.erf(x * (1.0 / math.sqrt(2.0))))


def _mm(a, b):
    # all MXU contractions: (possibly) bf16 operands, f32 accumulation
    return jnp.dot(a.astype(MATMUL_DTYPE), b.astype(MATMUL_DTYPE),
                   preferred_element_type=jnp.float32)


def bert_block_kernel(x_ref, wqkv_ref, wo_ref, win_ref, wout_ref, bias_ref,
                      kmask_ref, attn_bias_ref, vmask_ref, out_ref):
    x = x_ref[...]                                  # (BS, D) f32
    bias = bias_ref[...]                            # (8, 128) f32 slab, loaded once

    b_qkv = bias[0:1, :QKV]                         # (1, 96)
    b_in = bias[1:2, :DM]                           # (1, 128)
    b_o = bias[2:3, :D]                             # (1, 32)
    b_out = bias[3:4, :D]
    ln1w = bias[4:5, :D]
    ln1b = bias[5:6, :D]
    ln2w = bias[6:7, :D]
    ln2b = bias[7:8, :D]

    # ---- fused QKV projection: one (BS, D) @ (D, 3*H*DH) matmul + one bias add ----
    qkv = _mm(x, wqkv_ref[...]) + b_qkv             # (BS, 96) f32
    q_all = qkv[:, 0:HD]                            # (BS, HD) columns = h*DH + d
    k_all = qkv[:, HD:2 * HD]
    v_all = qkv[:, 2 * HD:3 * HD]

    # ---- attention core: all (batch, head) pairs fused into 3 MXU matmuls ----
    # scores[i, h*BS + t] = <q[i, h, :], k[t, h, :]> / sqrt(DH)
    kT = jnp.transpose(k_all)                       # (HD, BS)
    k_rep = jnp.concatenate([kT] * H, axis=1)       # (HD, SK)
    k_bd = k_rep * kmask_ref[...]                   # zero cross-head blocks -> block-diag K
    scores = _mm(q_all, k_bd) * (1.0 / math.sqrt(DH))   # (BS, SK)
    scores = scores + attn_bias_ref[...]            # -1e9 on cross-batch key positions

    m = jnp.max(scores, axis=-1, keepdims=True)     # row max is a valid per-head stabilizer
    e = jnp.exp(scores - m)                         # (BS, SK); masked entries -> 0

    # P @ V and the per-head softmax denominator share one block-diagonal V layout.
    vmask = vmask_ref[...]                          # (SK, HD) 0/1 head-block mask
    v_bd = jnp.concatenate([v_all] * H, axis=0) * vmask   # (SK, HD)
    z_un = _mm(e, v_bd)                             # (BS, HD) un-normalized per-head P@V
    den = _mm(e, vmask)                             # per-head sum(e), broadcast over DH lanes
    z = z_un * pl.reciprocal(den, approx=APPROX_RECIP)    # EUP reciprocal when bf16 path on

    # ---- fused output projection: one (BS, H*DH) @ (H*DH, D) matmul ----
    attn_out = _mm(z, wo_ref[...]) + b_o

    # ---- resid_mid = LN1(resid_pre + attn_out) ----
    resid_mid = _layernorm(x + attn_out, ln1w, ln1b)

    # ---- MLP (erf GELU) ----
    hidden = _gelu(_mm(resid_mid, win_ref[...]) + b_in)   # (BS, DM) f32 elementwise
    mlp_out = _mm(hidden, wout_ref[...]) + b_out

    # ---- resid_post = LN2(resid_mid + mlp_out) ----
    out_ref[...] = _layernorm(resid_mid + mlp_out, ln2w, ln2b)


def _attention_masks():
    """Compile-time constant masks for the block-diagonal-over-heads attention core."""
    r = np.arange(HD)[:, None]                      # K rows: h'*DH + d
    c = np.arange(SK)[None, :]                      # cols:   h*BS + t
    kmask = ((r // DH) == (c // BS)).astype(np.float32)         # (HD, SK)

    ri = np.arange(BS)[:, None]                     # query index i = b*S + s
    cj = np.arange(SK)[None, :]                     # key col = h*BS + t
    same_batch = (ri // S) == ((cj % BS) // S)
    attn_bias = np.where(same_batch, 0.0, NEG_INF).astype(np.float32)   # (BS, SK)

    rv = np.arange(SK)[:, None]                     # V rows: h*BS + t
    cv = np.arange(HD)[None, :]                     # cols:   h'*DH + d
    vmask = ((rv // BS) == (cv // DH)).astype(np.float32)       # (SK, HD)
    return kmask, attn_bias, vmask


def _pack_params(params):
    """Layout plumbing (wrapper side): fuse heads into MXU weights + pack small biases."""
    (wq, wk, wv, bq, bk, bv, wo, bo,
     win, bin_, wout, bout, ln1w, ln1b, ln2w, ln2b) = params

    def heads_to_cols(w):                            # (H, D, DH) -> (D, H*DH)
        return jnp.transpose(w, (1, 0, 2)).reshape(D, H * DH)

    w_qkv = jnp.concatenate(
        [heads_to_cols(wq), heads_to_cols(wk), heads_to_cols(wv)],
        axis=-1).astype(MATMUL_DTYPE)                # (D, 3*H*DH), bf16 -> half the DMA bytes
    w_o = wo.reshape(H * DH, D).astype(MATMUL_DTYPE)
    w_in = win.astype(MATMUL_DTYPE)
    w_out = wout.astype(MATMUL_DTYPE)

    def pad128(v):
        v = v.reshape(-1).astype(jnp.float32)
        return jnp.pad(v, (0, 128 - v.shape[0]))

    bias = jnp.stack([
        pad128(jnp.concatenate([bq.reshape(-1), bk.reshape(-1), bv.reshape(-1)])),
        pad128(bin_),
        pad128(bo),
        pad128(bout),
        pad128(ln1w), pad128(ln1b), pad128(ln2w), pad128(ln2b),
    ], axis=0)                                       # (8, 128) lane-dense slab

    return w_qkv, w_o, w_in, w_out, bias


def _bert_block_impl(resid_pre, params):
    w_qkv, w_o, w_in, w_out, bias = _pack_params(params)
    kmask, attn_bias, vmask = _attention_masks()
    x2d = resid_pre.reshape(BS, D)

    def full(shape):
        return pl.BlockSpec(shape, lambda i: (0,) * len(shape))

    out2d = pl.pallas_call(
        bert_block_kernel,
        out_shape=jax.ShapeDtypeStruct((BS, D), jnp.float32),
        grid=(1,),                                   # single program over the whole slab
        in_specs=[
            full((BS, D)),          # residual slab (aliased with the output)
            full((D, QKV)),         # fused W_QKV (bf16)
            full((HD, D)),          # fused W_O   (bf16)
            full((D, DM)),          # W_in        (bf16)
            full((DM, D)),          # W_out       (bf16)
            full((8, 128)),         # packed biases / LN params (f32)
            full((HD, SK)),         # head block mask for K
            full((BS, SK)),         # additive cross-batch mask
            full((SK, HD)),         # head block mask for V / softmax denominator
        ],
        out_specs=full((BS, D)),
        input_output_aliases={0: 0},                 # residual stream updated in place
        compiler_params=pltpu.CompilerParams(
            dimension_semantics=("arbitrary",)),
    )(x2d, w_qkv, w_o, w_in, w_out, bias, kmask, attn_bias, vmask)

    return out2d.reshape(B, S, D)


bert_block = jax.jit(_bert_block_impl)


# ---------------- pure-JAX reference (original TransformerLens layout) ----------------
def reference_block(x, params):
    (wq, wk, wv, bq, bk, bv, wo, bo,
     win, bin_, wout, bout, ln1w, ln1b, ln2w, ln2b) = params
    q = jnp.einsum('bsd,hdk->bhsk', x, wq) + bq[None, :, None, :]
    k = jnp.einsum('bsd,hdk->bhsk', x, wk) + bk[None, :, None, :]
    v = jnp.einsum('bsd,hdk->bhsk', x, wv) + bv[None, :, None, :]
    scores = jnp.einsum('bhsk,bhtk->bhst', q, k) / math.sqrt(DH)
    pattern = jax.nn.softmax(scores, axis=-1)
    z = jnp.einsum('bhst,bhtk->bhsk', pattern, v)
    attn_out = jnp.einsum('bhsk,hkd->bsd', z, wo) + bo[0]
    resid_mid = _layernorm(x + attn_out, ln1w[0], ln1b[0])
    h = _gelu(resid_mid @ win + bin_[0])
    mlp_out = h @ wout + bout[0]
    return _layernorm(resid_mid + mlp_out, ln2w[0], ln2b[0])


def init_params(key):
    ks = jax.random.split(key, 16)
    std = 0.02
    wq = jax.random.normal(ks[0], (H, D, DH), jnp.float32) * std
    wk = jax.random.normal(ks[1], (H, D, DH), jnp.float32) * std
    wv = jax.random.normal(ks[2], (H, D, DH), jnp.float32) * std
    bq = jax.random.normal(ks[3], (H, DH), jnp.float32) * std
    bk = jax.random.normal(ks[4], (H, DH), jnp.float32) * std
    bv = jax.random.normal(ks[5], (H, DH), jnp.float32) * std
    wo = jax.random.normal(ks[6], (H, DH, D), jnp.float32) * std
    bo = jax.random.normal(ks[7], (1, D), jnp.float32) * std
    win = jax.random.normal(ks[8], (D, DM), jnp.float32) * std
    bin_ = jax.random.normal(ks[9], (1, DM), jnp.float32) * std
    wout = jax.random.normal(ks[10], (DM, D), jnp.float32) * std
    bout = jax.random.normal(ks[11], (1, D), jnp.float32) * std
    ln1w = 1.0 + 0.05 * jax.random.normal(ks[12], (1, D), jnp.float32)
    ln1b = 0.05 * jax.random.normal(ks[13], (1, D), jnp.float32)
    ln2w = 1.0 + 0.05 * jax.random.normal(ks[14], (1, D), jnp.float32)
    ln2b = 0.05 * jax.random.normal(ks[15], (1, D), jnp.float32)
    return (wq, wk, wv, bq, bk, bv, wo, bo,
            win, bin_, wout, bout, ln1w, ln1b, ln2w, ln2b)


if __name__ == "__main__":
    key = jax.random.PRNGKey(0)
    kx, kp = jax.random.split(key)
    resid_pre = jax.random.normal(kx, (B, S, D), jnp.float32)
    params = init_params(kp)

    # strict-precision f32 reference (review correctness note)
    with jax.default_matmul_precision("highest"):
        ref = reference_block(resid_pre, params)
    ref = jax.block_until_ready(ref)

    out = jax.block_until_ready(bert_block(resid_pre, params))

    assert out.shape == (B, S, D)
    # bf16 matmul operands + approx reciprocal -> relaxed tolerance (f32 path: 1e-4)
    tol = 1e-4 if MATMUL_DTYPE == jnp.float32 else 2e-2
    assert jnp.allclose(out, ref, atol=tol, rtol=tol), "mismatch vs. pure-JAX reference"

    print("KERNEL_OK")
</pallas_src>

<mosaic_0001>
module attributes {stable_mosaic.version = 11 : i64} {
  func.func @bert_block_kernel(%arg0: i32, %arg1: memref<16x32xf32, #tpu.memory_space<vmem>>, %arg2: memref<32x96xbf16, #tpu.memory_space<vmem>>, %arg3: memref<32x32xbf16, #tpu.memory_space<vmem>>, %arg4: memref<32x128xbf16, #tpu.memory_space<vmem>>, %arg5: memref<128x32xbf16, #tpu.memory_space<vmem>>, %arg6: memref<8x128xf32, #tpu.memory_space<vmem>>, %arg7: memref<32x64xf32, #tpu.memory_space<vmem>>, %arg8: memref<16x64xf32, #tpu.memory_space<vmem>>, %arg9: memref<64x32xf32, #tpu.memory_space<vmem>>, %arg10: memref<16x32xf32, #tpu.memory_space<vmem>>) attributes {dimension_semantics = [#tpu.dimension_semantics<arbitrary>], iteration_bounds = array<i64: 1>, scalar_prefetch = 0 : i64, scratch_operands = 0 : i64, tpu.core_type = #tpu.core_type<tc>, window_params = [{pipeline_mode = #tpu.pipeline_mode<synchronous>, transform_indices = @transform_0, window_bounds = array<i64: 16, 32>}, {pipeline_mode = #tpu.pipeline_mode<synchronous>, transform_indices = @transform_1, window_bounds = array<i64: 32, 96>}, {pipeline_mode = #tpu.pipeline_mode<synchronous>, transform_indices = @transform_2, window_bounds = array<i64: 32, 32>}, {pipeline_mode = #tpu.pipeline_mode<synchronous>, transform_indices = @transform_3, window_bounds = array<i64: 32, 128>}, {pipeline_mode = #tpu.pipeline_mode<synchronous>, transform_indices = @transform_4, window_bounds = array<i64: 128, 32>}, {pipeline_mode = #tpu.pipeline_mode<synchronous>, transform_indices = @transform_5, window_bounds = array<i64: 8, 128>}, {pipeline_mode = #tpu.pipeline_mode<synchronous>, transform_indices = @transform_6, window_bounds = array<i64: 32, 64>}, {pipeline_mode = #tpu.pipeline_mode<synchronous>, transform_indices = @transform_7, window_bounds = array<i64: 16, 64>}, {pipeline_mode = #tpu.pipeline_mode<synchronous>, transform_indices = @transform_8, window_bounds = array<i64: 64, 32>}, {pipeline_mode = #tpu.pipeline_mode<synchronous>, transform_indices = @transform_9, window_bounds = array<i64: 16, 32>}]} {
    %c0 = arith.constant 0 : index
    %c0_0 = arith.constant 0 : index
    %0 = vector.load %arg1[%c0, %c0_0] : memref<16x32xf32, #tpu.memory_space<vmem>>, vector<16x32xf32>
    %c0_1 = arith.constant 0 : index
    %c0_2 = arith.constant 0 : index
    %1 = vector.load %arg6[%c0_1, %c0_2] : memref<8x128xf32, #tpu.memory_space<vmem>>, vector<8x128xf32>
    %2 = vector.extract_strided_slice %1 {offsets = [0, 0], sizes = [1, 96], strides = [1, 1]} : vector<8x128xf32> to vector<1x96xf32>
    %3 = vector.extract_strided_slice %1 {offsets = [1, 0], sizes = [1, 128], strides = [1, 1]} : vector<8x128xf32> to vector<1x128xf32>
    %4 = vector.extract_strided_slice %1 {offsets = [2, 0], sizes = [1, 32], strides = [1, 1]} : vector<8x128xf32> to vector<1x32xf32>
    %5 = vector.extract_strided_slice %1 {offsets = [3, 0], sizes = [1, 32], strides = [1, 1]} : vector<8x128xf32> to vector<1x32xf32>
    %6 = vector.extract_strided_slice %1 {offsets = [4, 0], sizes = [1, 32], strides = [1, 1]} : vector<8x128xf32> to vector<1x32xf32>
    %7 = vector.extract_strided_slice %1 {offsets = [5, 0], sizes = [1, 32], strides = [1, 1]} : vector<8x128xf32> to vector<1x32xf32>
    %8 = vector.extract_strided_slice %1 {offsets = [6, 0], sizes = [1, 32], strides = [1, 1]} : vector<8x128xf32> to vector<1x32xf32>
    %9 = vector.extract_strided_slice %1 {offsets = [7, 0], sizes = [1, 32], strides = [1, 1]} : vector<8x128xf32> to vector<1x32xf32>
    %c0_3 = arith.constant 0 : index
    %c0_4 = arith.constant 0 : index
    %10 = vector.load %arg2[%c0_3, %c0_4] : memref<32x96xbf16, #tpu.memory_space<vmem>>, vector<32x96xbf16>
    %11 = arith.truncf %0 : vector<16x32xf32> to vector<16x32xbf16>
    %cst = arith.constant dense<0.000000e+00> : vector<16x96xf32>
    %12 = tpu.matmul %11, %10, %cst {dimension_numbers = #tpu.dot_dimension_numbers<[1], [0], [0], [1], [0, 0, 1, 1], [], []>} : vector<16x32xbf16>, vector<32x96xbf16>, vector<16x96xf32> -> vector<16x96xf32>
    %13 = vector.broadcast %2 : vector<1x96xf32> to vector<16x96xf32>
    %14 = arith.addf %12, %13 : vector<16x96xf32>
    %15 = vector.extract_strided_slice %14 {offsets = [0, 0], sizes = [16, 32], strides = [1, 1]} : vector<16x96xf32> to vector<16x32xf32>
    %16 = vector.extract_strided_slice %14 {offsets = [0, 32], sizes = [16, 32], strides = [1, 1]} : vector<16x96xf32> to vector<16x32xf32>
    %17 = vector.extract_strided_slice %14 {offsets = [0, 64], sizes = [16, 32], strides = [1, 1]} : vector<16x96xf32> to vector<16x32xf32>
    %18 = tpu.transpose %16, [1, 0] : vector<16x32xf32> -> vector<32x16xf32>
    %19 = tpu.concatenate %18, %18, %18, %18 in 1 : vector<32x16xf32>, vector<32x16xf32>, vector<32x16xf32>, vector<32x16xf32> -> vector<32x64xf32>
    %c0_5 = arith.constant 0 : index
    %c0_6 = arith.constant 0 : index
    %20 = vector.load %arg7[%c0_5, %c0_6] : memref<32x64xf32, #tpu.memory_space<vmem>>, vector<32x64xf32>
    %21 = arith.mulf %19, %20 : vector<32x64xf32>
    %22 = arith.truncf %15 : vector<16x32xf32> to vector<16x32xbf16>
    %23 = arith.truncf %21 : vector<32x64xf32> to vector<32x64xbf16>
    %cst_7 = arith.constant dense<0.000000e+00> : vector<16x64xf32>
    %24 = tpu.matmul %22, %23, %cst_7 {dimension_numbers = #tpu.dot_dimension_numbers<[1], [0], [0], [1], [0, 0, 1, 1], [], []>} : vector<16x32xbf16>, vector<32x64xbf16>, vector<16x64xf32> -> vector<16x64xf32>
    %cst_8 = arith.constant 0.353553385 : f32
    %25 = vector.broadcast %cst_8 : f32 to vector<16x64xf32>
    %26 = arith.mulf %24, %25 : vector<16x64xf32>
    %c0_9 = arith.constant 0 : index
    %c0_10 = arith.constant 0 : index
    %27 = vector.load %arg8[%c0_9, %c0_10] : memref<16x64xf32, #tpu.memory_space<vmem>>, vector<16x64xf32>
    %28 = arith.addf %26, %27 : vector<16x64xf32>
    %cst_11 = arith.constant dense<0xFF800000> : vector<16xf32>
    %29 = vector.multi_reduction <maximumf>, %28, %cst_11 [1] : vector<16x64xf32> to vector<16xf32>
    %30 = vector.shape_cast %29 : vector<16xf32> to vector<16x1xf32>
    %31 = vector.broadcast %30 : vector<16x1xf32> to vector<16x64xf32>
    %32 = arith.subf %28, %31 : vector<16x64xf32>
    %33 = math.exp %32 : vector<16x64xf32>
    %c0_12 = arith.constant 0 : index
    %c0_13 = arith.constant 0 : index
    %34 = vector.load %arg9[%c0_12, %c0_13] : memref<64x32xf32, #tpu.memory_space<vmem>>, vector<64x32xf32>
    %35 = tpu.concatenate %17, %17, %17, %17 in 0 : vector<16x32xf32>, vector<16x32xf32>, vector<16x32xf32>, vector<16x32xf32> -> vector<64x32xf32>
    %36 = arith.mulf %35, %34 : vector<64x32xf32>
    %37 = arith.truncf %33 : vector<16x64xf32> to vector<16x64xbf16>
    %38 = arith.truncf %36 : vector<64x32xf32> to vector<64x32xbf16>
    %cst_14 = arith.constant dense<0.000000e+00> : vector<16x32xf32>
    %39 = tpu.matmul %37, %38, %cst_14 {dimension_numbers = #tpu.dot_dimension_numbers<[1], [0], [0], [1], [0, 0, 1, 1], [], []>} : vector<16x64xbf16>, vector<64x32xbf16>, vector<16x32xf32> -> vector<16x32xf32>
    %40 = arith.truncf %33 : vector<16x64xf32> to vector<16x64xbf16>
    %41 = arith.truncf %34 : vector<64x32xf32> to vector<64x32xbf16>
    %cst_15 = arith.constant dense<0.000000e+00> : vector<16x32xf32>
    %42 = tpu.matmul %40, %41, %cst_15 {dimension_numbers = #tpu.dot_dimension_numbers<[1], [0], [0], [1], [0, 0, 1, 1], [], []>} : vector<16x64xbf16>, vector<64x32xbf16>, vector<16x32xf32> -> vector<16x32xf32>
    %43 = tpu.reciprocal %42 {approx = true} : vector<16x32xf32> -> vector<16x32xf32>
    %44 = arith.mulf %39, %43 : vector<16x32xf32>
    %c0_16 = arith.constant 0 : index
    %c0_17 = arith.constant 0 : index
    %45 = vector.load %arg3[%c0_16, %c0_17] : memref<32x32xbf16, #tpu.memory_space<vmem>>, vector<32x32xbf16>
    %46 = arith.truncf %44 : vector<16x32xf32> to vector<16x32xbf16>
    %cst_18 = arith.constant dense<0.000000e+00> : vector<16x32xf32>
    %47 = tpu.matmul %46, %45, %cst_18 {dimension_numbers = #tpu.dot_dimension_numbers<[1], [0], [0], [1], [0, 0, 1, 1], [], []>} : vector<16x32xbf16>, vector<32x32xbf16>, vector<16x32xf32> -> vector<16x32xf32>
    %48 = vector.broadcast %4 : vector<1x32xf32> to vector<16x32xf32>
    %49 = arith.addf %47, %48 : vector<16x32xf32>
    %50 = arith.addf %0, %49 : vector<16x32xf32>
    %cst_19 = arith.constant dense<0.000000e+00> : vector<16xf32>
    %51 = vector.multi_reduction <add>, %50, %cst_19 [1] : vector<16x32xf32> to vector<16xf32>
    %52 = vector.shape_cast %51 : vector<16xf32> to vector<16x1xf32>
    %cst_20 = arith.constant 3.200000e+01 : f32
    %53 = vector.broadcast %cst_20 : f32 to vector<16x1xf32>
    %54 = arith.divf %52, %53 : vector<16x1xf32>
    %55 = vector.broadcast %54 : vector<16x1xf32> to vector<16x32xf32>
    %56 = arith.subf %50, %55 : vector<16x32xf32>
    %57 = arith.mulf %56, %56 : vector<16x32xf32>
    %cst_21 = arith.constant dense<0.000000e+00> : vector<16xf32>
    %58 = vector.multi_reduction <add>, %57, %cst_21 [1] : vector<16x32xf32> to vector<16xf32>
    %59 = vector.shape_cast %58 : vector<16xf32> to vector<16x1xf32>
    %cst_22 = arith.constant 3.200000e+01 : f32
    %60 = vector.broadcast %cst_22 : f32 to vector<16x1xf32>
    %61 = arith.divf %59, %60 : vector<16x1xf32>
    %cst_23 = arith.constant 9.99999974E-6 : f32
    %62 = vector.broadcast %cst_23 : f32 to vector<16x1xf32>
    %63 = arith.addf %61, %62 : vector<16x1xf32>
    %64 = math.rsqrt %63 : vector<16x1xf32>
    %65 = vector.broadcast %64 : vector<16x1xf32> to vector<16x32xf32>
    %66 = arith.mulf %56, %65 : vector<16x32xf32>
    %67 = vector.broadcast %6 : vector<1x32xf32> to vector<16x32xf32>
    %68 = arith.mulf %66, %67 : vector<16x32xf32>
    %69 = vector.broadcast %7 : vector<1x32xf32> to vector<16x32xf32>
    %70 = arith.addf %68, %69 : vector<16x32xf32>
    %c0_24 = arith.constant 0 : index
    %c0_25 = arith.constant 0 : index
    %71 = vector.load %arg4[%c0_24, %c0_25] : memref<32x128xbf16, #tpu.memory_space<vmem>>, vector<32x128xbf16>
    %72 = arith.truncf %70 : vector<16x32xf32> to vector<16x32xbf16>
    %cst_26 = arith.constant dense<0.000000e+00> : vector<16x128xf32>
    %73 = tpu.matmul %72, %71, %cst_26 {dimension_numbers = #tpu.dot_dimension_numbers<[1], [0], [0], [1], [0, 0, 1, 1], [], []>} : vector<16x32xbf16>, vector<32x128xbf16>, vector<16x128xf32> -> vector<16x128xf32>
    %74 = vector.broadcast %3 : vector<1x128xf32> to vector<16x128xf32>
    %75 = arith.addf %73, %74 : vector<16x128xf32>
    %cst_27 = arith.constant 5.000000e-01 : f32
    %76 = vector.broadcast %cst_27 : f32 to vector<16x128xf32>
    %77 = arith.mulf %76, %75 : vector<16x128xf32>
    %cst_28 = arith.constant 0.707106769 : f32
    %78 = vector.broadcast %cst_28 : f32 to vector<16x128xf32>
    %79 = arith.mulf %75, %78 : vector<16x128xf32>
    %80 = math.erf %79 : vector<16x128xf32>
    %cst_29 = arith.constant 1.000000e+00 : f32
    %81 = vector.broadcast %cst_29 : f32 to vector<16x128xf32>
    %82 = arith.addf %81, %80 : vector<16x128xf32>
    %83 = arith.mulf %77, %82 : vector<16x128xf32>
    %c0_30 = arith.constant 0 : index
    %c0_31 = arith.constant 0 : index
    %84 = vector.load %arg5[%c0_30, %c0_31] : memref<128x32xbf16, #tpu.memory_space<vmem>>, vector<128x32xbf16>
    %85 = arith.truncf %83 : vector<16x128xf32> to vector<16x128xbf16>
    %cst_32 = arith.constant dense<0.000000e+00> : vector<16x32xf32>
    %86 = tpu.matmul %85, %84, %cst_32 {dimension_numbers = #tpu.dot_dimension_numbers<[1], [0], [0], [1], [0, 0, 1, 1], [], []>} : vector<16x128xbf16>, vector<128x32xbf16>, vector<16x32xf32> -> vector<16x32xf32>
    %87 = vector.broadcast %5 : vector<1x32xf32> to vector<16x32xf32>
    %88 = arith.addf %86, %87 : vector<16x32xf32>
    %89 = arith.addf %70, %88 : vector<16x32xf32>
    %cst_33 = arith.constant dense<0.000000e+00> : vector<16xf32>
    %90 = vector.multi_reduction <add>, %89, %cst_33 [1] : vector<16x32xf32> to vector<16xf32>
    %91 = vector.shape_cast %90 : vector<16xf32> to vector<16x1xf32>
    %cst_34 = arith.constant 3.200000e+01 : f32
    %92 = vector.broadcast %cst_34 : f32 to vector<16x1xf32>
    %93 = arith.divf %91, %92 : vector<16x1xf32>
    %94 = vector.broadcast %93 : vector<16x1xf32> to vector<16x32xf32>
    %95 = arith.subf %89, %94 : vector<16x32xf32>
    %96 = arith.mulf %95, %95 : vector<16x32xf32>
    %cst_35 = arith.constant dense<0.000000e+00> : vector<16xf32>
    %97 = vector.multi_reduction <add>, %96, %cst_35 [1] : vector<16x32xf32> to vector<16xf32>
    %98 = vector.shape_cast %97 : vector<16xf32> to vector<16x1xf32>
    %cst_36 = arith.constant 3.200000e+01 : f32
    %99 = vector.broadcast %cst_36 : f32 to vector<16x1xf32>
    %100 = arith.divf %98, %99 : vector<16x1xf32>
    %cst_37 = arith.constant 9.99999974E-6 : f32
    %101 = vector.broadcast %cst_37 : f32 to vector<16x1xf32>
    %102 = arith.addf %100, %101 : vector<16x1xf32>
    %103 = math.rsqrt %102 : vector<16x1xf32>
    %104 = vector.broadcast %103 : vector<16x1xf32> to vector<16x32xf32>
    %105 = arith.mulf %95, %104 : vector<16x32xf32>
    %106 = vector.broadcast %8 : vector<1x32xf32> to vector<16x32xf32>
    %107 = arith.mulf %105, %106 : vector<16x32xf32>
    %108 = vector.broadcast %9 : vector<1x32xf32> to vector<16x32xf32>
    %109 = arith.addf %107, %108 : vector<16x32xf32>
    %c0_38 = arith.constant 0 : index
    %c0_39 = arith.constant 0 : index
    %110 = vector.load %arg10[%c0_38, %c0_39] : memref<16x32xf32, #tpu.memory_space<vmem>>, vector<16x32xf32>
    tpu.vector_store %arg10[%c0_38, %c0_39], %109 {strides = array<i32>} : memref<16x32xf32, #tpu.memory_space<vmem>>, vector<16x32xf32>,
    return
  }
  func.func @transform_0(%arg0: i32) -> (i32, i32) {
    %c0_i32 = arith.constant 0 : i32
    %c0_i32_0 = arith.constant 0 : i32
    %c0_i32_1 = arith.constant 0 : i32
    return %c0_i32, %c0_i32_0 : i32, i32
  }
  func.func @transform_1(%arg0: i32) -> (i32, i32) {
    %c0_i32 = arith.constant 0 : i32
    %c0_i32_0 = arith.constant 0 : i32
    %c0_i32_1 = arith.constant 0 : i32
    return %c0_i32, %c0_i32_0 : i32, i32
  }
  func.func @transform_2(%arg0: i32) -> (i32, i32) {
    %c0_i32 = arith.constant 0 : i32
    %c0_i32_0 = arith.constant 0 : i32
    %c0_i32_1 = arith.constant 0 : i32
    return %c0_i32, %c0_i32_0 : i32, i32
  }
  func.func @transform_3(%arg0: i32) -> (i32, i32) {
    %c0_i32 = arith.constant 0 : i32
    %c0_i32_0 = arith.constant 0 : i32
    %c0_i32_1 = arith.constant 0 : i32
    return %c0_i32, %c0_i32_0 : i32, i32
  }
  func.func @transform_4(%arg0: i32) -> (i32, i32) {
    %c0_i32 = arith.constant 0 : i32
    %c0_i32_0 = arith.constant 0 : i32
    %c0_i32_1 = arith.constant 0 : i32
    return %c0_i32, %c0_i32_0 : i32, i32
  }
  func.func @transform_5(%arg0: i32) -> (i32, i32) {
    %c0_i32 = arith.constant 0 : i32
    %c0_i32_0 = arith.constant 0 : i32
    %c0_i32_1 = arith.constant 0 : i32
    return %c0_i32, %c0_i32_0 : i32, i32
  }
  func.func @transform_6(%arg0: i32) -> (i32, i32) {
    %c0_i32 = arith.constant 0 : i32
    %c0_i32_0 = arith.constant 0 : i32
    %c0_i32_1 = arith.constant 0 : i32
    return %c0_i32, %c0_i32_0 : i32, i32
  }
  func.func @transform_7(%arg0: i32) -> (i32, i32) {
    %c0_i32 = arith.constant 0 : i32
    %c0_i32_0 = arith.constant 0 : i32
    %c0_i32_1 = arith.constant 0 : i32
    return %c0_i32, %c0_i32_0 : i32, i32
  }
  func.func @transform_8(%arg0: i32) -> (i32, i32) {
    %c0_i32 = arith.constant 0 : i32
    %c0_i32_0 = arith.constant 0 : i32
    %c0_i32_1 = arith.constant 0 : i32
    return %c0_i32, %c0_i32_0 : i32, i32
  }
  func.func @transform_9(%arg0: i32) -> (i32, i32) {
    %c0_i32 = arith.constant 0 : i32
    %c0_i32_0 = arith.constant 0 : i32
    %c0_i32_1 = arith.constant 0 : i32
    return %c0_i32, %c0_i32_0 : i32, i32
  }
}

</mosaic_0001>

<llo_original>
// kernel: _bert_block_impl.1
$region0: #{_bert_block_impl.1}
  #allocation0 [shape = 'u32[]', space=smem, size = 0x4, offset = 0x4, fixed_abs, tag = 'smem constant byte address 0x4 - core index']
  #allocation1 [shape = 'u32[144,128]{1,0:T(1,128)}', space=vmem, size = 0x12000, scoped, tag = 'internal scratch']
  %s0 = inlined_call_operand.vmem [shape: f32[16,32], index: 0, kind: input, shape index: {}, may-alias: {0,9}]
  %s1 = inlined_call_operand.vmem [shape: bf16[32,96], index: 1, kind: input, shape index: {}]
  %s2 = inlined_call_operand.vmem [shape: bf16[32,32], index: 2, kind: input, shape index: {}]
  %s3 = inlined_call_operand.vmem [shape: bf16[32,128], index: 3, kind: input, shape index: {}]
  %s4 = inlined_call_operand.vmem [shape: bf16[128,32], index: 4, kind: input, shape index: {}]
  %s5 = inlined_call_operand.vmem [shape: f32[8,128], index: 5, kind: input, shape index: {}]
  %s6 = inlined_call_operand.vmem [shape: f32[32,64], index: 6, kind: input, shape index: {}]
  %s7 = inlined_call_operand.vmem [shape: f32[16,64], index: 7, kind: input, shape index: {}]
  %s8 = inlined_call_operand.vmem [shape: f32[64,32], index: 8, kind: input, shape index: {}]
  %s9 = inlined_call_operand.vmem [shape: f32[16,32], index: 9, kind: output, shape index: {}, may-alias: {0,9}]
  %s10 = sld [smem:[#allocation0]]
  $region46: #{_bert_block_impl.1} parent=0
    _
  %s12 = ssub.s32 1, %s10
  %s13 = scalar_select 0, %s12, %s10
  // Predicated region
  $region2: #{_bert_block_impl.1} parent=0 // pred_check
    _
  $region3: #{_bert_block_impl.1} parent=0 // pred_check_branch
    %15 = sbr.rel (0) target = $region5
  $region4: #{_bert_block_impl.1} parent=0 // pred_region
    _
  $region5: #{_bert_block_impl.1} parent=0 // pred_fallthru
    _
  // Predicated region
  $region6: #{_bert_block_impl.1} parent=0 // pred_check
    _
  $region7: #{_bert_block_impl.1} parent=0 // pred_check_branch
    %17 = sbr.rel (0) target = $region9
  $region8: #{_bert_block_impl.1} parent=0 // pred_region
    _
  $region9: #{_bert_block_impl.1} parent=0 // pred_fallthru
    _
  // Predicated region
  $region10: #{_bert_block_impl.1} parent=0 // pred_check
    _
  $region11: #{_bert_block_impl.1} parent=0 // pred_check_branch
    %19 = sbr.rel (0) target = $region13
  $region12: #{_bert_block_impl.1} parent=0 // pred_region
    _
  $region13: #{_bert_block_impl.1} parent=0 // pred_fallthru
    _
  // Predicated region
  $region14: #{_bert_block_impl.1} parent=0 // pred_check
    _
  $region15: #{_bert_block_impl.1} parent=0 // pred_check_branch
    %21 = sbr.rel (0) target = $region17
  $region16: #{_bert_block_impl.1} parent=0 // pred_region
    _
  $region17: #{_bert_block_impl.1} parent=0 // pred_fallthru
    _
  // Predicated region
  $region18: #{_bert_block_impl.1} parent=0 // pred_check
    _
  $region19: #{_bert_block_impl.1} parent=0 // pred_check_branch
    %23 = sbr.rel (0) target = $region21
  $region20: #{_bert_block_impl.1} parent=0 // pred_region
    _
  $region21: #{_bert_block_impl.1} parent=0 // pred_fallthru
    _
  // Predicated region
  $region22: #{_bert_block_impl.1} parent=0 // pred_check
    _
  $region23: #{_bert_block_impl.1} parent=0 // pred_check_branch
    %25 = sbr.rel (0) target = $region25
  $region24: #{_bert_block_impl.1} parent=0 // pred_region
    _
  $region25: #{_bert_block_impl.1} parent=0 // pred_fallthru
    _
  // Predicated region
  $region26: #{_bert_block_impl.1} parent=0 // pred_check
    _
  $region27: #{_bert_block_impl.1} parent=0 // pred_check_branch
    %27 = sbr.rel (0) target = $region29
  $region28: #{_bert_block_impl.1} parent=0 // pred_region
    _
  $region29: #{_bert_block_impl.1} parent=0 // pred_fallthru
    _
  // Predicated region
  $region30: #{_bert_block_impl.1} parent=0 // pred_check
    _
  $region31: #{_bert_block_impl.1} parent=0 // pred_check_branch
    %29 = sbr.rel (0) target = $region33
  $region32: #{_bert_block_impl.1} parent=0 // pred_region
    _
  $region33: #{_bert_block_impl.1} parent=0 // pred_fallthru
    _
  // Predicated region
  $region34: #{_bert_block_impl.1} parent=0 // pred_check
    _
  $region35: #{_bert_block_impl.1} parent=0 // pred_check_branch
    %31 = sbr.rel (0) target = $region37
  $region36: #{_bert_block_impl.1} parent=0 // pred_region
    _
  $region37: #{_bert_block_impl.1} parent=0 // pred_fallthru
    _
  %v33 = vld [vmem:[%s0] sm:$0xff]
  %v34 = vld [vmem:[%s0 + $0x8] sm:$0xff]
  %v35 = vld [vmem:[%s5] sm:$0xff]
  %v36 = vld [vmem:[%s1] sm:$0xf]
  %v37 = vld [vmem:[%s1 + $0x4] sm:$0xf]
  %v38 = vld [vmem:[%s1 + $0x8] sm:$0xf]
  %v39 = vld [vmem:[%s1 + $0xc] sm:$0xf]
  %v40 = vpack.c.bf16 %v34, %v33
  %v41 = vlaneseq
  %v42 = vshrl.u32 %v41, 7
  %v43 = vsub.s32 0, %v42
  %v44 = vrot.slane %v35, %v43
  %v49 = vunpack.c.l.b16 %v36
  %v50 = vunpack.c.l.b16 %v37
  %v51 = vunpack.c.l.b16 %v38
  %v52 = vunpack.c.l.b16 %v39
  %v53 = vpack.c.b16 %v50, %v49
  %v54 = vpack.c.b16 %v52, %v51
  %vm57 = vcmask 261120
  %v59 = vsel %vm57, %v40, 0
  %61 = vmatprep.subr.bf16.mxu0 0
  %62 = vmatpush1.bf16.msra.mxu0 %v53
  %63 = vmatprep.subr.bf16.mxu0 0
  %64 = vmatpush1.bf16.msra.mxu0 %v54
  %65 = vmatprep.subr.bf16.mxu0 0
  %66 = vmatpush1.bf16.msra.mxu0 0
  %67 = vmatprep.subr.bf16.mxu0 0
  %68 = vmatpush1.bf16.msra.mxu0 0
  %69 = vmatprep.subr.bf16.mxu0 0
  %70 = vmatpush1.bf16.msra.mxu0 0
  %71 = vmatprep.subr.bf16.mxu0 0
  %72 = vmatpush1.bf16.msra.mxu0 0
  %73 = vmatprep.subr.bf16.mxu0 0
  %74 = vmatpush1.bf16.msra.mxu0 0
  %75 = vmatprep.subr.bf16.mxu0 0
  %76 = vmatpush1.bf16.msra.mxu0 0
  %77 = vmatprep.subr.bf16.mxu0 0
  %78 = vmatpush1.bf16.msra.mxu0 0
  %79 = vmatprep.subr.bf16.mxu0 0
  %80 = vmatpush1.bf16.msra.mxu0 0
  %81 = vmatprep.subr.bf16.mxu0 0
  %82 = vmatpush1.bf16.msra.mxu0 0
  %83 = vmatprep.subr.bf16.mxu0 0
  %84 = vmatpush1.bf16.msra.mxu0 0
  %85 = vmatprep.subr.bf16.mxu0 0
  %86 = vmatpush1.bf16.msra.mxu0 0
  %87 = vmatprep.subr.bf16.mxu0 0
  %88 = vmatpush1.bf16.msra.mxu0 0
  %89 = vmatprep.subr.bf16.mxu0 0
  %90 = vmatpush1.bf16.msra.mxu0 0
  %91 = vmatprep.subr.bf16.mxu0 0
  %92 = vmatpush1.bf16.msra.mxu0 0
  %93 = vmatprep.mubr.bf16.mxu0 0
  %94 = vmatmul.mubr.bf16.gmra.mrb[0].mxu0 %v59
  %v95 = vpop.f32.mrb[0].mxu0
  %v96 = vadd.f32 %v44, %v95
  %v97 = vpop.f32.mrb[0].mxu0
  %v98 = vpop.f32.mrb[0].mxu0
  %v99 = vadd.f32 %v44, %v98
  %v100 = vpop.f32.mrb[0].mxu0
  %101 = vdwg.mxu0
  %104 = vrot.lane.b32.xlu0 %v96, 96
  %v105 = vpop.permute.xlu0 %104
  %106 = vrot.lane.b32.xlu0 %v99, 96
  %v107 = vpop.permute.xlu0 %106
  %110 = vxpose.xlu0.b32.start [1/16] %v105, 128
  %111 = vxpose.xlu0.b32.cont [2/16] %v107, 128
  %112 = vxpose.xlu0.b32.cont [3/16] 0.0, 128
  %113 = vxpose.xlu0.b32.cont [4/16] 0.0, 128
  %114 = vxpose.xlu0.b32.cont [5/16] 0.0, 128
  %115 = vxpose.xlu0.b32.cont [6/16] 0.0, 128
  %116 = vxpose.xlu0.b32.cont [7/16] 0.0, 128
  %117 = vxpose.xlu0.b32.cont [8/16] 0.0, 128
  %118 = vxpose.xlu0.b32.cont [9/16] 0.0, 128
  %119 = vxpose.xlu0.b32.cont [10/16] 0.0, 128
  %120 = vxpose.xlu0.b32.cont [11/16] 0.0, 128
  %121 = vxpose.xlu0.b32.cont [12/16] 0.0, 128
  %122 = vxpose.xlu0.b32.cont [13/16] 0.0, 128
  %123 = vxpose.xlu0.b32.cont [14/16] 0.0, 128
  %124 = vxpose.xlu0.b32.cont [15/16] 0.0, 128
  %125 = vxpose.xlu0.b32.end [16/16] 0.0, 128
  %v126 = vpop.trf.xlu0
  %v127 = vpop.trf.xlu0
  %v128 = vpop.trf.xlu0
  %v129 = vpop.trf.xlu0
  %v130 = vpop.trf.xlu0
  %v131 = vpop.trf.xlu0
  %v132 = vpop.trf.xlu0
  %v133 = vpop.trf.xlu0
  %v134 = vpop.trf.xlu0
  %v135 = vpop.trf.xlu0
  %v136 = vpop.trf.xlu0
  %v137 = vpop.trf.xlu0
  %v138 = vpop.trf.xlu0
  %v139 = vpop.trf.xlu0
  %v140 = vpop.trf.xlu0
  %v141 = vpop.trf.xlu0
  %146 = vrot.lane.b32.xlu0 %v126, 16
  %v147 = vpop.permute.xlu0 %146
  %148 = vrot.lane.b32.xlu0 %v127, 16
  %v149 = vpop.permute.xlu0 %148
  %150 = vrot.lane.b32.xlu0 %v128, 16
  %v151 = vpop.permute.xlu0 %150
  %152 = vrot.lane.b32.xlu0 %v129, 16
  %v153 = vpop.permute.xlu0 %152
  %158 = vrot.lane.b32.xlu0 %v126, 32
  %v159 = vpop.permute.xlu0 %158
  %160 = vrot.lane.b32.xlu0 %v127, 32
  %v161 = vpop.permute.xlu0 %160
  %162 = vrot.lane.b32.xlu0 %v128, 32
  %v163 = vpop.permute.xlu0 %162
  %164 = vrot.lane.b32.xlu0 %v129, 32
  %v165 = vpop.permute.xlu0 %164
  %170 = vrot.lane.b32.xlu0 %v126, 48
  %v171 = vpop.permute.xlu0 %170
  %172 = vrot.lane.b32.xlu0 %v127, 48
  %v173 = vpop.permute.xlu0 %172
  %174 = vrot.lane.b32.xlu0 %v128, 48
  %v175 = vpop.permute.xlu0 %174
  %176 = vrot.lane.b32.xlu0 %v129, 48
  %v177 = vpop.permute.xlu0 %176
  %vm182 = vcmask 130048
  %v183 = vsel %vm182, %v126, %v147
  %v184 = vsel %vm182, %v127, %v149
  %v185 = vsel %vm182, %v128, %v151
  %v186 = vsel %vm182, %v129, %v153
  %v187 = vsel %vm57, %v183, %v159
  %v188 = vsel %vm57, %v184, %v161
  %v189 = vsel %vm57, %v185, %v163
  %v190 = vsel %vm57, %v186, %v165
  %vm191 = vcmask 392192
  %v192 = vsel %vm191, %v187, %v171
  %v193 = vsel %vm191, %v188, %v173
  %v194 = vsel %vm191, %v189, %v175
  %v195 = vsel %vm191, %v190, %v177
  %v196 = vld [vmem:[%s6] sm:$0xff]
  %v197 = vld [vmem:[%s6 + $0x8] sm:$0xff]
  %v198 = vld [vmem:[%s6 + $0x10] sm:$0xff]
  %v199 = vld [vmem:[%s6 + $0x18] sm:$0xff]
  %v200 = vmul.f32 %v192, %v196
  %v201 = vmul.f32 %v193, %v197
  %v202 = vmul.f32 %v194, %v198
  %v203 = vmul.f32 %v195, %v199
  %v204 = vpack.c.bf16 %v99, %v96
  %v205 = vpack.c.bf16 %v201, %v200
  %v206 = vpack.c.bf16 %v203, %v202
  %v208 = vsel %vm57, %v204, 0
  %210 = vmatprep.subr.bf16.mxu0 0
  %211 = vmatpush1.bf16.msra.mxu0 %v205
  %212 = vmatprep.subr.bf16.mxu0 0
  %213 = vmatpush1.bf16.msra.mxu0 %v206
  %214 = vmatprep.subr.bf16.mxu0 0
  %215 = vmatpush1.bf16.msra.mxu0 0
  %216 = vmatprep.subr.bf16.mxu0 0
  %217 = vmatpush1.bf16.msra.mxu0 0
  %218 = vmatprep.subr.bf16.mxu0 0
  %219 = vmatpush1.bf16.msra.mxu0 0
  %220 = vmatprep.subr.bf16.mxu0 0
  %221 = vmatpush1.bf16.msra.mxu0 0
  %222 = vmatprep.subr.bf16.mxu0 0
  %223 = vmatpush1.bf16.msra.mxu0 0
  %224 = vmatprep.subr.bf16.mxu0 0
  %225 = vmatpush1.bf16.msra.mxu0 0
  %226 = vmatprep.subr.bf16.mxu0 0
  %227 = vmatpush1.bf16.msra.mxu0 0
  %228 = vmatprep.subr.bf16.mxu0 0
  %229 = vmatpush1.bf16.msra.mxu0 0
  %230 = vmatprep.subr.bf16.mxu0 0
  %231 = vmatpush1.bf16.msra.mxu0 0
  %232 = vmatprep.subr.bf16.mxu0 0
  %233 = vmatpush1.bf16.msra.mxu0 0
  %234 = vmatprep.subr.bf16.mxu0 0
  %235 = vmatpush1.bf16.msra.mxu0 0
  %236 = vmatprep.subr.bf16.mxu0 0
  %237 = vmatpush1.bf16.msra.mxu0 0
  %238 = vmatprep.subr.bf16.mxu0 0
  %239 = vmatpush1.bf16.msra.mxu0 0
  %240 = vmatprep.subr.bf16.mxu0 0
  %241 = vmatpush1.bf16.msra.mxu0 0
  %242 = vmatprep.mubr.bf16.mxu0 0
  %243 = vmatmul.mubr.bf16.gmra.mrb[0].mxu0 %v208
  %v244 = vpop.f32.mrb[0].mxu0
  %v245 = vadd.f32 0.0, %v244
  %v246 = vpop.f32.mrb[0].mxu0
  %v247 = vpop.f32.mrb[0].mxu0
  %v248 = vadd.f32 0.0, %v247
  %v249 = vpop.f32.mrb[0].mxu0
  %250 = vdwg.mxu0
  %v251 = vmul.f32 %v245, 0.35355338
  %v252 = vmul.f32 %v248, 0.35355338
  %v253 = vld [vmem:[%s7] sm:$0xff]
  %v254 = vld [vmem:[%s7 + $0x8] sm:$0xff]
  %v255 = vadd.f32 %v251, %v253
  %v256 = vadd.f32 %v252, %v254
  %vm257 = vcmask 523264
  %v258 = vsel %vm257, %v255, -inf
  %259 = vmax.xlane.f32.xlu0 %v258
  %v260 = vpop.xlane.xlu0 %259
  %v261 = vsel %vm257, %v256, -inf
  %262 = vmax.xlane.f32.xlu0 %v261
  %v263 = vpop.xlane.xlu0 %262
  %v264 = vsub.f32 %v255, %v260
  %v265 = vsub.f32 %v256, %v263
  %v266 = vmul.f32 %v264, 1.442695
  %v267 = vpow.pop %v266
  %v268 = vmul.f32 %v265, 1.442695
  %v269 = vpow.pop %v268
  %v270 = vld [vmem:[%s8] sm:$0xff]
  %v271 = vld [vmem:[%s8 + $0x8] sm:$0xff]
  %v272 = vld [vmem:[%s8 + $0x10] sm:$0xff]
  %v273 = vld [vmem:[%s8 + $0x18] sm:$0xff]
  %v274 = vld [vmem:[%s8 + $0x20] sm:$0xff]
  %v275 = vld [vmem:[%s8 + $0x28] sm:$0xff]
  %v276 = vld [vmem:[%s8 + $0x30] sm:$0xff]
  %v277 = vld [vmem:[%s8 + $0x38] sm:$0xff]
  %286 = vrot.lane.b32.xlu0 %v270, 64
  %v287 = vpop.permute.xlu0 %286
  %288 = vrot.lane.b32.xlu0 %v271, 64
  %v289 = vpop.permute.xlu0 %288
  %290 = vrot.lane.b32.xlu0 %v272, 64
  %v291 = vpop.permute.xlu0 %290
  %292 = vrot.lane.b32.xlu0 %v273, 64
  %v293 = vpop.permute.xlu0 %292
  %294 = vrot.lane.b32.xlu0 %v274, 64
  %v295 = vpop.permute.xlu0 %294
  %296 = vrot.lane.b32.xlu0 %v275, 64
  %v297 = vpop.permute.xlu0 %296
  %298 = vrot.lane.b32.xlu0 %v276, 64
  %v299 = vpop.permute.xlu0 %298
  %300 = vrot.lane.b32.xlu0 %v277, 64
  %v301 = vpop.permute.xlu0 %300
  %v310 = vmul.f32 %v96, %v287
  %v311 = vmul.f32 %v99, %v289
  %v312 = vmul.f32 %v96, %v291
  %v313 = vmul.f32 %v99, %v293
  %v314 = vmul.f32 %v96, %v295
  %v315 = vmul.f32 %v99, %v297
  %v316 = vmul.f32 %v96, %v299
  %v317 = vmul.f32 %v99, %v301
  %v318 = vpack.c.bf16 %v269, %v267
  %v319 = vpack.c.bf16 %v311, %v310
  %v320 = vpack.c.bf16 %v313, %v312
  %v321 = vpack.c.bf16 %v315, %v314
  %v322 = vpack.c.bf16 %v317, %v316
  %327 = vrot.lane.b32.xlu0 %v319, 64
  %v328 = vpop.permute.xlu0 %327
  %329 = vrot.lane.b32.xlu0 %v320, 64
  %v330 = vpop.permute.xlu0 %329
  %331 = vrot.lane.b32.xlu0 %v321, 64
  %v332 = vpop.permute.xlu0 %331
  %333 = vrot.lane.b32.xlu0 %v322, 64
  %v334 = vpop.permute.xlu0 %333
  %v340 = vsel %vm257, %v318, 0
  %342 = vmatprep.subr.bf16.mxu0 0
  %343 = vmatpush1.bf16.msra.mxu0 %v328
  %344 = vmatprep.subr.bf16.mxu0 0
  %345 = vmatpush1.bf16.msra.mxu0 %v330
  %346 = vmatprep.subr.bf16.mxu0 0
  %347 = vmatpush1.bf16.msra.mxu0 %v332
  %348 = vmatprep.subr.bf16.mxu0 0
  %349 = vmatpush1.bf16.msra.mxu0 %v334
  %350 = vmatprep.subr.bf16.mxu0 0
  %351 = vmatpush1.bf16.msra.mxu0 0
  %352 = vmatprep.subr.bf16.mxu0 0
  %353 = vmatpush1.bf16.msra.mxu0 0
  %354 = vmatprep.subr.bf16.mxu0 0
  %355 = vmatpush1.bf16.msra.mxu0 0
  %356 = vmatprep.subr.bf16.mxu0 0
  %357 = vmatpush1.bf16.msra.mxu0 0
  %358 = vmatprep.subr.bf16.mxu0 0
  %359 = vmatpush1.bf16.msra.mxu0 0
  %360 = vmatprep.subr.bf16.mxu0 0
  %361 = vmatpush1.bf16.msra.mxu0 0
  %362 = vmatprep.subr.bf16.mxu0 0
  %363 = vmatpush1.bf16.msra.mxu0 0
  %364 = vmatprep.subr.bf16.mxu0 0
  %365 = vmatpush1.bf16.msra.mxu0 0
  %366 = vmatprep.subr.bf16.mxu0 0
  %367 = vmatpush1.bf16.msra.mxu0 0
  %368 = vmatprep.subr.bf16.mxu0 0
  %369 = vmatpush1.bf16.msra.mxu0 0
  %370 = vmatprep.subr.bf16.mxu0 0
  %371 = vmatpush1.bf16.msra.mxu0 0
  %372 = vmatprep.subr.bf16.mxu0 0
  %373 = vmatpush1.bf16.msra.mxu0 0
  %374 = vmatprep.mubr.bf16.mxu0 0
  %375 = vmatmul.mubr.bf16.gmra.mrb[0].mxu0 %v340
  %v376 = vpop.f32.mrb[0].mxu0
  %v377 = vadd.f32 0.0, %v376
  %v378 = vpop.f32.mrb[0].mxu0
  %v379 = vpop.f32.mrb[0].mxu0
  %v380 = vadd.f32 0.0, %v379
  %v381 = vpop.f32.mrb[0].mxu0
  %382 = vdwg.mxu0
  %v383 = vpack.c.bf16 %v271, %v270
  %v384 = vpack.c.bf16 %v273, %v272
  %v385 = vpack.c.bf16 %v275, %v274
  %v386 = vpack.c.bf16 %v277, %v276
  %387 = vmatprep.subr.bf16.mxu0 0
  %388 = vmatpush1.bf16.msra.mxu0 %v383
  %389 = vmatprep.subr.bf16.mxu0 0
  %390 = vmatpush1.bf16.msra.mxu0 %v384
  %391 = vmatprep.subr.bf16.mxu0 0
  %392 = vmatpush1.bf16.msra.mxu0 %v385
  %393 = vmatprep.subr.bf16.mxu0 0
  %394 = vmatpush1.bf16.msra.mxu0 %v386
  %395 = vmatprep.subr.bf16.mxu0 0
  %396 = vmatpush1.bf16.msra.mxu0 0
  %397 = vmatprep.subr.bf16.mxu0 0
  %398 = vmatpush1.bf16.msra.mxu0 0
  %399 = vmatprep.subr.bf16.mxu0 0
  %400 = vmatpush1.bf16.msra.mxu0 0
  %401 = vmatprep.subr.bf16.mxu0 0
  %402 = vmatpush1.bf16.msra.mxu0 0
  %403 = vmatprep.subr.bf16.mxu0 0
  %404 = vmatpush1.bf16.msra.mxu0 0
  %405 = vmatprep.subr.bf16.mxu0 0
  %406 = vmatpush1.bf16.msra.mxu0 0
  %407 = vmatprep.subr.bf16.mxu0 0
  %408 = vmatpush1.bf16.msra.mxu0 0
  %409 = vmatprep.subr.bf16.mxu0 0
  %410 = vmatpush1.bf16.msra.mxu0 0
  %411 = vmatprep.subr.bf16.mxu0 0
  %412 = vmatpush1.bf16.msra.mxu0 0
  %413 = vmatprep.subr.bf16.mxu0 0
  %414 = vmatpush1.bf16.msra.mxu0 0
  %415 = vmatprep.subr.bf16.mxu0 0
  %416 = vmatpush1.bf16.msra.mxu0 0
  %417 = vmatprep.subr.bf16.mxu0 0
  %418 = vmatpush1.bf16.msra.mxu0 0
  %419 = vmatprep.mubr.bf16.mxu0 0
  %420 = vmatmul.mubr.bf16.gmra.mrb[0].mxu0 %v340
  %v421 = vpop.f32.mrb[0].mxu0
  %v422 = vadd.f32 0.0, %v421
  %v423 = vpop.f32.mrb[0].mxu0
  %v424 = vpop.f32.mrb[0].mxu0
  %v425 = vadd.f32 0.0, %v424
  %v426 = vpop.f32.mrb[0].mxu0
  %427 = vdwg.mxu0
  %v428 = vrcp.pop %v422
  %v429 = vrcp.pop %v425
  %v430 = vmul.f32 %v377, %v428
  %v431 = vmul.f32 %v380, %v429
  %v432 = vld [vmem:[%s2] sm:$0xf]
  %v433 = vld [vmem:[%s2 + $0x4] sm:$0xf]
  %v434 = vld [vmem:[%s2 + $0x8] sm:$0xf]
  %v435 = vld [vmem:[%s2 + $0xc] sm:$0xf]
  %v436 = vpack.c.bf16 %v431, %v430
  %v437 = vlaneseq
  %v438 = vshrl.u32 %v437, 7
  %v439 = vsub.s32 2, %v438
  %v440 = vrot.slane %v35, %v439
  %v445 = vunpack.c.l.b16 %v432
  %v446 = vunpack.c.l.b16 %v433
  %v447 = vunpack.c.l.b16 %v434
  %v448 = vunpack.c.l.b16 %v435
  %v449 = vpack.c.b16 %v446, %v445
  %v450 = vpack.c.b16 %v448, %v447
  %v454 = vsel %vm57, %v436, 0
  %456 = vmatprep.subr.bf16.mxu0 0
  %457 = vmatpush1.bf16.msra.mxu0 %v449
  %458 = vmatprep.subr.bf16.mxu0 0
  %459 = vmatpush1.bf16.msra.mxu0 %v450
  %460 = vmatprep.subr.bf16.mxu0 0
  %461 = vmatpush1.bf16.msra.mxu0 0
  %462 = vmatprep.subr.bf16.mxu0 0
  %463 = vmatpush1.bf16.msra.mxu0 0
  %464 = vmatprep.subr.bf16.mxu0 0
  %465 = vmatpush1.bf16.msra.mxu0 0
  %466 = vmatprep.subr.bf16.mxu0 0
  %467 = vmatpush1.bf16.msra.mxu0 0
  %468 = vmatprep.subr.bf16.mxu0 0
  %469 = vmatpush1.bf16.msra.mxu0 0
  %470 = vmatprep.subr.bf16.mxu0 0
  %471 = vmatpush1.bf16.msra.mxu0 0
  %472 = vmatprep.subr.bf16.mxu0 0
  %473 = vmatpush1.bf16.msra.mxu0 0
  %474 = vmatprep.subr.bf16.mxu0 0
  %475 = vmatpush1.bf16.msra.mxu0 0
  %476 = vmatprep.subr.bf16.mxu0 0
  %477 = vmatpush1.bf16.msra.mxu0 0
  %478 = vmatprep.subr.bf16.mxu0 0
  %479 = vmatpush1.bf16.msra.mxu0 0
  %480 = vmatprep.subr.bf16.mxu0 0
  %481 = vmatpush1.bf16.msra.mxu0 0
  %482 = vmatprep.subr.bf16.mxu0 0
  %483 = vmatpush1.bf16.msra.mxu0 0
  %484 = vmatprep.subr.bf16.mxu0 0
  %485 = vmatpush1.bf16.msra.mxu0 0
  %486 = vmatprep.subr.bf16.mxu0 0
  %487 = vmatpush1.bf16.msra.mxu0 0
  %488 = vmatprep.mubr.bf16.mxu0 0
  %489 = vmatmul.mubr.bf16.gmra.mrb[0].mxu0 %v454
  %v490 = vpop.f32.mrb[0].mxu0
  %v491 = vadd.f32 %v440, %v490
  %v492 = vpop.f32.mrb[0].mxu0
  %v493 = vpop.f32.mrb[0].mxu0
  %v494 = vadd.f32 %v440, %v493
  %v495 = vpop.f32.mrb[0].mxu0
  %496 = vdwg.mxu0
  %v497 = vadd.f32 %v33, %v491
  %v498 = vadd.f32 %v34, %v494
  %v499 = vsel %vm57, %v497, 0.0
  %500 = vadd.xlane.f32.xlu0 %v499
  %v501 = vpop.xlane.xlu0 %500
  %v502 = vsel %vm57, %v498, 0.0
  %503 = vadd.xlane.f32.xlu0 %v502
  %v504 = vpop.xlane.xlu0 %503
  %v505 = vrcp.pop 32.0
  %v506 = vmul.f32 %v501, %v505
  %v507 = vmul.f32 %v504, %v505
  %v508 = vsub.f32 %v497, %v506
  %v509 = vsub.f32 %v498, %v507
  %v510 = vmul.f32 %v508, %v508
  %v511 = vmul.f32 %v509, %v509
  %v512 = vsel %vm57, %v510, 0.0
  %513 = vadd.xlane.f32.xlu0 %v512
  %v514 = vpop.xlane.xlu0 %513
  %v515 = vsel %vm57, %v511, 0.0
  %516 = vadd.xlane.f32.xlu0 %v515
  %v517 = vpop.xlane.xlu0 %516
  %v518 = vmul.f32 %v514, %v505
  %v519 = vmul.f32 %v517, %v505
  %v520 = vadd.f32 %v518, 1e-05
  %v521 = vadd.f32 %v519, 1e-05
  %v522 = vrsqrt.pop %v520
  %v523 = vrsqrt.pop %v521
  %v524 = vmul.f32 %v508, %v522
  %v525 = vmul.f32 %v509, %v523
  %v526 = vlaneseq
  %v527 = vshrl.u32 %v526, 7
  %v528 = vsub.s32 4, %v527
  %v529 = vrot.slane %v35, %v528
  %v530 = vmul.f32 %v524, %v529
  %v531 = vmul.f32 %v525, %v529
  %v532 = vlaneseq
  %v533 = vshrl.u32 %v532, 7
  %v534 = vsub.s32 5, %v533
  %v535 = vrot.slane %v35, %v534
  %v536 = vadd.f32 %v530, %v535
  %v537 = vadd.f32 %v531, %v535
  %v538 = vld [vmem:[%s3] sm:$0xf]
  %v539 = vld [vmem:[%s3 + $0x4] sm:$0xf]
  %v540 = vld [vmem:[%s3 + $0x8] sm:$0xf]
  %v541 = vld [vmem:[%s3 + $0xc] sm:$0xf]
  %v542 = vpack.c.bf16 %v537, %v536
  %v543 = vlaneseq
  %v544 = vshrl.u32 %v543, 7
  %v545 = vsub.s32 1, %v544
  %v546 = vrot.slane %v35, %v545
  %v551 = vunpack.c.l.b16 %v538
  %v552 = vunpack.c.l.b16 %v539
  %v553 = vunpack.c.l.b16 %v540
  %v554 = vunpack.c.l.b16 %v541
  %v555 = vpack.c.b16 %v552, %v551
  %v556 = vpack.c.b16 %v554, %v553
  %v560 = vsel %vm57, %v542, 0
  %562 = vmatprep.subr.bf16.mxu0 0
  %563 = vmatpush1.bf16.msra.mxu0 %v555
  %564 = vmatprep.subr.bf16.mxu0 0
  %565 = vmatpush1.bf16.msra.mxu0 %v556
  %566 = vmatprep.subr.bf16.mxu0 0
  %567 = vmatpush1.bf16.msra.mxu0 0
  %568 = vmatprep.subr.bf16.mxu0 0
  %569 = vmatpush1.bf16.msra.mxu0 0
  %570 = vmatprep.subr.bf16.mxu0 0
  %571 = vmatpush1.bf16.msra.mxu0 0
  %572 = vmatprep.subr.bf16.mxu0 0
  %573 = vmatpush1.bf16.msra.mxu0 0
  %574 = vmatprep.subr.bf16.mxu0 0
  %575 = vmatpush1.bf16.msra.mxu0 0
  %576 = vmatprep.subr.bf16.mxu0 0
  %577 = vmatpush1.bf16.msra.mxu0 0
  %578 = vmatprep.subr.bf16.mxu0 0
  %579 = vmatpush1.bf16.msra.mxu0 0
  %580 = vmatprep.subr.bf16.mxu0 0
  %581 = vmatpush1.bf16.msra.mxu0 0
  %582 = vmatprep.subr.bf16.mxu0 0
  %583 = vmatpush1.bf16.msra.mxu0 0
  %584 = vmatprep.subr.bf16.mxu0 0
  %585 = vmatpush1.bf16.msra.mxu0 0
  %586 = vmatprep.subr.bf16.mxu0 0
  %587 = vmatpush1.bf16.msra.mxu0 0
  %588 = vmatprep.subr.bf16.mxu0 0
  %589 = vmatpush1.bf16.msra.mxu0 0
  %590 = vmatprep.subr.bf16.mxu0 0
  %591 = vmatpush1.bf16.msra.mxu0 0
  %592 = vmatprep.subr.bf16.mxu0 0
  %593 = vmatpush1.bf16.msra.mxu0 0
  %594 = vmatprep.mubr.bf16.mxu0 0
  %595 = vmatmul.mubr.bf16.gmra.mrb[0].mxu0 %v560
  %v596 = vpop.f32.mrb[0].mxu0
  %v597 = vadd.f32 %v546, %v596
  %v598 = vpop.f32.mrb[0].mxu0
  %v599 = vpop.f32.mrb[0].mxu0
  %v600 = vadd.f32 %v546, %v599
  %v601 = vpop.f32.mrb[0].mxu0
  %602 = vdwg.mxu0
  %v603 = vmul.f32 %v597, 0.5
  %v604 = vmul.f32 %v600, 0.5
  %v605 = vmul.f32 %v597, 0.70710677
  %v606 = vmul.f32 %v600, 0.70710677
  %v607 = verf.f32.pop %v605
  %v608 = verf.f32.pop %v606
  %v609 = vadd.f32 %v607, 1.0
  %v610 = vadd.f32 %v608, 1.0
  %v611 = vmul.f32 %v603, %v609
  %v612 = vmul.f32 %v604, %v610
  %v613 = vld [vmem:[%s4] sm:$0xf]
  %v614 = vld [vmem:[%s4 + $0x4] sm:$0xf]
  %v615 = vld [vmem:[%s4 + $0x8] sm:$0xf]
  %v616 = vld [vmem:[%s4 + $0xc] sm:$0xf]
  %v617 = vld [vmem:[%s4 + $0x10] sm:$0xf]
  %v618 = vld [vmem:[%s4 + $0x14] sm:$0xf]
  %v619 = vld [vmem:[%s4 + $0x18] sm:$0xf]
  %v620 = vld [vmem:[%s4 + $0x1c] sm:$0xf]
  %v621 = vld [vmem:[%s4 + $0x20] sm:$0xf]
  %v622 = vld [vmem:[%s4 + $0x24] sm:$0xf]
  %v623 = vld [vmem:[%s4 + $0x28] sm:$0xf]
  %v624 = vld [vmem:[%s4 + $0x2c] sm:$0xf]
  %v625 = vld [vmem:[%s4 + $0x30] sm:$0xf]
  %v626 = vld [vmem:[%s4 + $0x34] sm:$0xf]
  %v627 = vld [vmem:[%s4 + $0x38] sm:$0xf]
  %v628 = vld [vmem:[%s4 + $0x3c] sm:$0xf]
  %v629 = vpack.c.bf16 %v612, %v611
  %v630 = vlaneseq
  %v631 = vshrl.u32 %v630, 7
  %v632 = vsub.s32 3, %v631
  %v633 = vrot.slane %v35, %v632
  %v650 = vunpack.c.l.b16 %v613
  %v651 = vunpack.c.l.b16 %v614
  %v652 = vunpack.c.l.b16 %v615
  %v653 = vunpack.c.l.b16 %v616
  %v654 = vunpack.c.l.b16 %v617
  %v655 = vunpack.c.l.b16 %v618
  %v656 = vunpack.c.l.b16 %v619
  %v657 = vunpack.c.l.b16 %v620
  %v658 = vunpack.c.l.b16 %v621
  %v659 = vunpack.c.l.b16 %v622
  %v660 = vunpack.c.l.b16 %v623
  %v661 = vunpack.c.l.b16 %v624
  %v662 = vunpack.c.l.b16 %v625
  %v663 = vunpack.c.l.b16 %v626
  %v664 = vunpack.c.l.b16 %v627
  %v665 = vunpack.c.l.b16 %v628
  %v666 = vpack.c.b16 %v651, %v650
  %v667 = vpack.c.b16 %v653, %v652
  %v668 = vpack.c.b16 %v655, %v654
  %v669 = vpack.c.b16 %v657, %v656
  %v670 = vpack.c.b16 %v659, %v658
  %v671 = vpack.c.b16 %v661, %v660
  %v672 = vpack.c.b16 %v663, %v662
  %v673 = vpack.c.b16 %v665, %v664
  %682 = vmatprep.subr.bf16.mxu0 0
  %683 = vmatpush1.bf16.msra.mxu0 %v666
  %684 = vmatprep.subr.bf16.mxu0 0
  %685 = vmatpush1.bf16.msra.mxu0 %v667
  %686 = vmatprep.subr.bf16.mxu0 0
  %687 = vmatpush1.bf16.msra.mxu0 %v668
  %688 = vmatprep.subr.bf16.mxu0 0
  %689 = vmatpush1.bf16.msra.mxu0 %v669
  %690 = vmatprep.subr.bf16.mxu0 0
  %691 = vmatpush1.bf16.msra.mxu0 %v670
  %692 = vmatprep.subr.bf16.mxu0 0
  %693 = vmatpush1.bf16.msra.mxu0 %v671
  %694 = vmatprep.subr.bf16.mxu0 0
  %695 = vmatpush1.bf16.msra.mxu0 %v672
  %696 = vmatprep.subr.bf16.mxu0 0
  %697 = vmatpush1.bf16.msra.mxu0 %v673
  %698 = vmatprep.subr.bf16.mxu0 0
  %699 = vmatpush1.bf16.msra.mxu0 0
  %700 = vmatprep.subr.bf16.mxu0 0
  %701 = vmatpush1.bf16.msra.mxu0 0
  %702 = vmatprep.subr.bf16.mxu0 0
  %703 = vmatpush1.bf16.msra.mxu0 0
  %704 = vmatprep.subr.bf16.mxu0 0
  %705 = vmatpush1.bf16.msra.mxu0 0
  %706 = vmatprep.subr.bf16.mxu0 0
  %707 = vmatpush1.bf16.msra.mxu0 0
  %708 = vmatprep.subr.bf16.mxu0 0
  %709 = vmatpush1.bf16.msra.mxu0 0
  %710 = vmatprep.subr.bf16.mxu0 0
  %711 = vmatpush1.bf16.msra.mxu0 0
  %712 = vmatprep.subr.bf16.mxu0 0
  %713 = vmatpush1.bf16.msra.mxu0 0
  %714 = vmatprep.mubr.bf16.mxu0 0
  %715 = vmatmul.mubr.bf16.gmra.mrb[0].mxu0 %v629
  %v716 = vpop.f32.mrb[0].mxu0
  %v717 = vadd.f32 %v633, %v716
  %v718 = vpop.f32.mrb[0].mxu0
  %v719 = vpop.f32.mrb[0].mxu0
  %v720 = vadd.f32 %v633, %v719
  %v721 = vpop.f32.mrb[0].mxu0
  %722 = vdwg.mxu0
  %v723 = vadd.f32 %v536, %v717
  %v724 = vadd.f32 %v537, %v720
  %v725 = vsel %vm57, %v723, 0.0
  %726 = vadd.xlane.f32.xlu0 %v725
  %v727 = vpop.xlane.xlu0 %726
  %v728 = vsel %vm57, %v724, 0.0
  %729 = vadd.xlane.f32.xlu0 %v728
  %v730 = vpop.xlane.xlu0 %729
  %v731 = vmul.f32 %v727, %v505
  %v732 = vmul.f32 %v730, %v505
  %v733 = vsub.f32 %v723, %v731
  %v734 = vsub.f32 %v724, %v732
  %v735 = vmul.f32 %v733, %v733
  %v736 = vmul.f32 %v734, %v734
  %v737 = vsel %vm57, %v735, 0.0
  %738 = vadd.xlane.f32.xlu0 %v737
  %v739 = vpop.xlane.xlu0 %738
  %v740 = vsel %vm57, %v736, 0.0
  %741 = vadd.xlane.f32.xlu0 %v740
  %v742 = vpop.xlane.xlu0 %741
  %v743 = vmul.f32 %v739, %v505
  %v744 = vmul.f32 %v742, %v505
  %v745 = vadd.f32 %v743, 1e-05
  %v746 = vadd.f32 %v744, 1e-05
  %v747 = vrsqrt.pop %v745
  %v748 = vrsqrt.pop %v746
  %v749 = vmul.f32 %v733, %v747
  %v750 = vmul.f32 %v734, %v748
  %v751 = vlaneseq
  %v752 = vshrl.u32 %v751, 7
  %v753 = vsub.s32 6, %v752
  %v754 = vrot.slane %v35, %v753
  %v755 = vmul.f32 %v749, %v754
  %v756 = vmul.f32 %v750, %v754
  %v757 = vlaneseq
  %v758 = vshrl.u32 %v757, 7
  %v759 = vsub.s32 7, %v758
  %v760 = vrot.slane %v35, %v759
  %v761 = vadd.f32 %v755, %v760
  %v762 = vadd.f32 %v756, %v760
  %763 = vst.msk [vmem:[%s9] sm:$0xff] %vm57, %v761
  %764 = vst.msk [vmem:[%s9 + $0x8] sm:$0xff] %vm57, %v762
  // Predicated region
  $region38: #{_bert_block_impl.1} parent=0 // pred_check
    _
  $region39: #{_bert_block_impl.1} parent=0 // pred_check_branch
    %766 = sbr.rel (0) target = $region41
  $region40: #{_bert_block_impl.1} parent=0 // pred_region
    _
  $region41: #{_bert_block_impl.1} parent=0 // pred_fallthru
    _
  // Predicated region
  $region42: #{_bert_block_impl.1} parent=0 // pred_check
    _
  $region43: #{_bert_block_impl.1} parent=0 // pred_check_branch
    %768 = sbr.rel (0) target = $region45
  $region44: #{_bert_block_impl.1} parent=0 // pred_region
    _
  $region45: #{_bert_block_impl.1} parent=0 // pred_fallthru
    _

</llo_original>
